<compile_context>
chip_gen: v6e
topology: v6e:2x2x1
jax: 0.10.0
libtpu: 0.0.40
codegen_flags: <defaults>
</compile_context>

<pallas_src>
import functools

import jax
import jax.numpy as jnp
from jax import lax
from jax.experimental import pallas as pl
from jax.experimental.pallas import tpu as pltpu

ALPHA = 0.9
GAMMA = 2  # integral -> explicit repeated multiply in the kernel

_LANES = 128
_VMEM_PIPELINE_BUDGET = 24 * 1024 * 1024   # double-buffered input blocks
_VMEM_LIMIT_BYTES = 48 * 1024 * 1024       # < v7x 64 MiB physical, > default scoped


def _focal_loss_kernel(logits_ref, targets_ref, out_ref, acc_ref, *,
                       n_valid, tile_n, tiles_per_chunk):
    c = pl.program_id(0)   # chunk (TensorCore-parallel axis)
    i = pl.program_id(1)   # tile within chunk (sequential reduction axis)

    @pl.when(i == 0)
    def _():
        acc_ref[...] = jnp.zeros_like(acc_ref)

    x = logits_ref[...].astype(jnp.float32)          # (TILE_N, C), f32 in-register
    t = targets_ref[...]                             # (TILE_N, 1) int32

    # Numerically-stable log-sum-exp over the class (lane) axis.
    m = jnp.max(x, axis=-1, keepdims=True)                               # (TILE_N, 1)
    lse = m + jnp.log(jnp.sum(jnp.exp(x - m), axis=-1, keepdims=True))   # (TILE_N, 1)

    # Target-logit gather via where-select (no float one-hot, no extra multiply).
    # TODO(synk): for C < 128 (e.g. C=32), lane-pack 128//C samples per vreg row and
    # replace these full-lane reduces with strided pltpu.roll max/add trees.
    class_ids = lax.broadcasted_iota(jnp.int32, x.shape, 1)              # (TILE_N, C)
    logit_t = jnp.sum(jnp.where(class_ids == t, x, 0.0),
                      axis=-1, keepdims=True)                            # (TILE_N, 1)

    # Cross-entropy + focal re-weighting (explicit square, GAMMA == 2).
    ce = lse - logit_t                                                   # (TILE_N, 1)
    pt = jnp.exp(-ce)
    w = 1.0 - pt
    focal = ALPHA * w * w * ce                                           # (TILE_N, 1)

    # Mask rows past the true N (ragged tail block and clamped overflow tiles).
    # NOTE: applied AFTER all nonlinear math so garbage/NaN never reaches the sum.
    tile_idx = c * tiles_per_chunk + i
    row = tile_idx * tile_n + lax.broadcasted_iota(jnp.int32, focal.shape, 0)
    focal = jnp.where(row < n_valid, focal, 0.0)

    acc_ref[...] += jnp.sum(focal, keepdims=True)                        # running f32 chunk sum

    @pl.when(i == pl.num_programs(1) - 1)
    def _():
        out_ref[...] = acc_ref[...].reshape(out_ref.shape)


def _pick_tile_n(n, c, itemsize):
    """Byte-budgeted row tiling: count the logits block AND the lane-padded
    (tile_n, 1)->(tile_n, 128) targets block, both double-buffered, against a
    ~24 MiB pipeline budget that fits every TPU generation (incl. v7x)."""
    sublane = 8 * (4 // itemsize)                      # 8 for f32, 16 for bf16
    c_vmem = ((c + _LANES - 1) // _LANES) * _LANES     # lane-padded class width in VMEM
    per_row = 2 * (c_vmem * itemsize + _LANES * 4)     # 2x double-buffered: logits + targets
    tile = max(sublane, (_VMEM_PIPELINE_BUDGET // per_row) // sublane * sublane)
    n_round = ((n + sublane - 1) // sublane) * sublane
    # TODO(synk): for very wide C (one (8, C) block alone exceeding the budget,
    # e.g. C ~ 1M on v7x) add a C-tiled / online-LSE streaming fallback.
    return min(tile, n_round)


def focal_loss(logits, targets, tile_n=None):
    """logits: (N, C) float32 or bfloat16; targets: (N,) int. Returns scalar f32."""
    n, c = logits.shape
    itemsize = jnp.dtype(logits.dtype).itemsize
    sublane = 8 * (4 // itemsize)

    if tile_n is None:
        tile_n = _pick_tile_n(n, c, itemsize)
    tile_n = max(sublane, ((int(tile_n) + sublane - 1) // sublane) * sublane)

    n_tiles = pl.cdiv(n, tile_n)
    # Leading "parallel" axis -> split across the two TensorCores on v7x; on
    # v5e/v6e it just runs sequentially with negligible overhead.
    num_chunks = min(2, n_tiles)
    tiles_per_chunk = pl.cdiv(n_tiles, num_chunks)

    targets2d = targets.reshape(n, 1).astype(jnp.int32)

    # Clamp overflow (chunk, tile) pairs to the last valid block; their rows are
    # >= n so the in-kernel mask zeroes their contribution. No OOB DMA possible.
    def _in_map(ci, ti):
        return (jnp.minimum(ci * tiles_per_chunk + ti, n_tiles - 1), 0)

    kernel = functools.partial(
        _focal_loss_kernel, n_valid=n, tile_n=tile_n, tiles_per_chunk=tiles_per_chunk)

    cost = pl.CostEstimate(
        flops=int(10 * n * c),
        transcendentals=int(n * c + 2 * n),
        bytes_accessed=int(n * c * itemsize + n * 4 + num_chunks * 4),
    )

    partials = pl.pallas_call(
        kernel,
        out_shape=jax.ShapeDtypeStruct((num_chunks, 1, 1), jnp.float32),
        grid_spec=pltpu.PrefetchScalarGridSpec(
            num_scalar_prefetch=0,
            grid=(num_chunks, tiles_per_chunk),
            in_specs=[
                pl.BlockSpec((tile_n, c), _in_map),
                pl.BlockSpec((tile_n, 1), _in_map),
            ],
            out_specs=pl.BlockSpec((1, 1, 1), lambda ci, ti: (ci, 0, 0)),
            scratch_shapes=[pltpu.VMEM((1, 1), jnp.float32)],
        ),
        compiler_params=pltpu.CompilerParams(
            dimension_semantics=("parallel", "arbitrary"),
            vmem_limit_bytes=_VMEM_LIMIT_BYTES,
        ),
        cost_estimate=cost,
    )(logits, targets2d)

    # Per-chunk partials tree-summed here; divide by the TRUE N.
    return jnp.sum(partials) / n


def focal_loss_ref(logits, targets):
    """Pure-JAX reference matching F.cross_entropy(reduction='none') semantics."""
    x = logits.astype(jnp.float32)
    lse = jax.nn.logsumexp(x, axis=-1)
    logit_t = jnp.take_along_axis(x, targets[:, None], axis=-1)[:, 0]
    ce = lse - logit_t
    pt = jnp.exp(-ce)
    return jnp.mean(ALPHA * (1.0 - pt) ** GAMMA * ce)


if __name__ == "__main__":
    key = jax.random.PRNGKey(0)
    k1, k2, k3, k4 = jax.random.split(key, 4)

    # Small deterministic example (matches the module's (N, C) logits contract).
    N, C = 8, 32
    logits = jax.random.normal(k1, (N, C), dtype=jnp.float32)
    targets = jax.random.randint(k2, (N,), 0, C, dtype=jnp.int32)

    loss = focal_loss(logits, targets)
    jax.block_until_ready(loss)
    ref = focal_loss_ref(logits, targets)
    assert jnp.allclose(loss, ref, rtol=1e-5, atol=1e-6), (loss, ref)

    # Exercise the un-padded ragged path + dual-chunk grid with a clamped
    # overflow tile: N=40, tile_n=16 -> 3 tiles, 2 chunks x 2 tiles (1 overflow).
    N2, C2 = 40, 32
    logits2 = jax.random.normal(k3, (N2, C2), dtype=jnp.float32)
    targets2 = jax.random.randint(k4, (N2,), 0, C2, dtype=jnp.int32)

    loss2 = focal_loss(logits2, targets2, tile_n=16)
    jax.block_until_ready(loss2)
    ref2 = focal_loss_ref(logits2, targets2)
    assert jnp.allclose(loss2, ref2, rtol=1e-5, atol=1e-6), (loss2, ref2)

    print("KERNEL_OK")
</pallas_src>

<mosaic_0001>
module attributes {stable_mosaic.version = 11 : i64} {
  func.func @_focal_loss_kernel(%arg0: i32, %arg1: i32, %arg2: memref<8x32xf32, #tpu.memory_space<vmem>>, %arg3: memref<8x1xi32, #tpu.memory_space<vmem>>, %arg4: memref<1x1x1xf32, #tpu.memory_space<vmem>>, %arg5: memref<1x1xf32, #tpu.memory_space<vmem>>) attributes {dimension_semantics = [#tpu.dimension_semantics<parallel>, #tpu.dimension_semantics<arbitrary>], iteration_bounds = array<i64: 1, 1>, scalar_prefetch = 0 : i64, scratch_operands = 1 : i64, tpu.core_type = #tpu.core_type<tc>, window_params = [{transform_indices = @transform_0, window_bounds = array<i64: 8, 32>}, {transform_indices = @transform_1, window_bounds = array<i64: 8, 1>}, {transform_indices = @transform_2, window_bounds = array<i64: 1, 1, 1>}]} {
    %c0_i32 = arith.constant 0 : i32
    %0 = arith.cmpi eq, %arg1, %c0_i32 : i32
    %1 = arith.extui %0 : i1 to i32
    %c0_i32_0 = arith.constant 0 : i32
    %2 = arith.cmpi ne, %1, %c0_i32_0 : i32
    scf.if %2 {
      %cst_19 = arith.constant 0.000000e+00 : f32
      %52 = vector.broadcast %cst_19 : f32 to vector<1x1xf32>
      %c0_20 = arith.constant 0 : index
      %c0_21 = arith.constant 0 : index
      %53 = vector.load %arg5[%c0_20, %c0_21] : memref<1x1xf32, #tpu.memory_space<vmem>>, vector<1x1xf32>
      tpu.vector_store %arg5[%c0_20, %c0_21], %52 {strides = array<i32>} : memref<1x1xf32, #tpu.memory_space<vmem>>, vector<1x1xf32>,
    } else {
    }
    %c0 = arith.constant 0 : index
    %c0_1 = arith.constant 0 : index
    %3 = vector.load %arg2[%c0, %c0_1] : memref<8x32xf32, #tpu.memory_space<vmem>>, vector<8x32xf32>
    %c0_2 = arith.constant 0 : index
    %c0_3 = arith.constant 0 : index
    %4 = vector.load %arg3[%c0_2, %c0_3] : memref<8x1xi32, #tpu.memory_space<vmem>>, vector<8x1xi32>
    %cst = arith.constant dense<0xFF800000> : vector<8xf32>
    %5 = vector.multi_reduction <maximumf>, %3, %cst [1] : vector<8x32xf32> to vector<8xf32>
    %6 = vector.shape_cast %5 : vector<8xf32> to vector<8x1xf32>
    %7 = vector.broadcast %6 : vector<8x1xf32> to vector<8x32xf32>
    %8 = arith.subf %3, %7 : vector<8x32xf32>
    %9 = math.exp %8 : vector<8x32xf32>
    %cst_4 = arith.constant dense<0.000000e+00> : vector<8xf32>
    %10 = vector.multi_reduction <add>, %9, %cst_4 [1] : vector<8x32xf32> to vector<8xf32>
    %11 = vector.shape_cast %10 : vector<8xf32> to vector<8x1xf32>
    %12 = math.log %11 : vector<8x1xf32>
    %13 = arith.addf %6, %12 : vector<8x1xf32>
    %14 = tpu.iota {dimensions = array<i32: 1>} : vector<8x32xi32>
    %15 = vector.broadcast %4 : vector<8x1xi32> to vector<8x32xi32>
    %16 = arith.cmpi eq, %14, %15 : vector<8x32xi32>
    %cst_5 = arith.constant 0.000000e+00 : f32
    %17 = vector.broadcast %cst_5 : f32 to vector<8x32xf32>
    %18 = arith.select %16, %3, %17 : vector<8x32xi1>, vector<8x32xf32>
    %cst_6 = arith.constant dense<0.000000e+00> : vector<8xf32>
    %19 = vector.multi_reduction <add>, %18, %cst_6 [1] : vector<8x32xf32> to vector<8xf32>
    %20 = vector.shape_cast %19 : vector<8xf32> to vector<8x1xf32>
    %21 = arith.subf %13, %20 : vector<8x1xf32>
    %cst_7 = arith.constant 0.000000e+00 : f32
    %22 = vector.broadcast %cst_7 : f32 to vector<8x1xf32>
    %23 = arith.subf %22, %21 : vector<8x1xf32>
    %24 = math.exp %23 : vector<8x1xf32>
    %cst_8 = arith.constant 1.000000e+00 : f32
    %25 = vector.broadcast %cst_8 : f32 to vector<8x1xf32>
    %26 = arith.subf %25, %24 : vector<8x1xf32>
    %cst_9 = arith.constant 0.899999976 : f32
    %27 = vector.broadcast %cst_9 : f32 to vector<8x1xf32>
    %28 = arith.mulf %27, %26 : vector<8x1xf32>
    %29 = arith.mulf %28, %26 : vector<8x1xf32>
    %30 = arith.mulf %29, %21 : vector<8x1xf32>
    %c1_i32 = arith.constant 1 : i32
    %31 = arith.muli %arg0, %c1_i32 : i32
    %32 = arith.addi %31, %arg1 : i32
    %c8_i32 = arith.constant 8 : i32
    %33 = arith.muli %32, %c8_i32 : i32
    %34 = tpu.iota {dimensions = array<i32: 0>} : vector<8x1xi32>
    %35 = vector.broadcast %33 : i32 to vector<8x1xi32>
    %36 = arith.addi %35, %34 : vector<8x1xi32>
    %c8_i32_10 = arith.constant 8 : i32
    %37 = vector.broadcast %c8_i32_10 : i32 to vector<8x1xi32>
    %38 = arith.cmpi slt, %36, %37 : vector<8x1xi32>
    %cst_11 = arith.constant 0.000000e+00 : f32
    %39 = vector.broadcast %cst_11 : f32 to vector<8x1xf32>
    %40 = arith.select %38, %30, %39 : vector<8x1xi1>, vector<8x1xf32>
    %c0_12 = arith.constant 0 : index
    %c0_13 = arith.constant 0 : index
    %41 = vector.load %arg5[%c0_12, %c0_13] : memref<1x1xf32, #tpu.memory_space<vmem>>, vector<1x1xf32>
    %42 = vector.shape_cast %40 : vector<8x1xf32> to vector<1x8x1xf32>
    %cst_14 = arith.constant dense<0.000000e+00> : vector<1xf32>
    %43 = vector.multi_reduction <add>, %42, %cst_14 [1, 2] : vector<1x8x1xf32> to vector<1xf32>
    %44 = vector.shape_cast %43 : vector<1xf32> to vector<1x1x1xf32>
    %45 = vector.extract %44[0, 0, 0] : f32 from vector<1x1x1xf32>
    %46 = vector.broadcast %45 : f32 to vector<1x1xf32>
    %47 = arith.addf %41, %46 : vector<1x1xf32>
    %c0_15 = arith.constant 0 : index
    %c0_16 = arith.constant 0 : index
    %48 = vector.load %arg5[%c0_15, %c0_16] : memref<1x1xf32, #tpu.memory_space<vmem>>, vector<1x1xf32>
    tpu.vector_store %arg5[%c0_15, %c0_16], %47 {strides = array<i32>} : memref<1x1xf32, #tpu.memory_space<vmem>>, vector<1x1xf32>,
    %c0_i32_17 = arith.constant 0 : i32
    %49 = arith.cmpi eq, %arg1, %c0_i32_17 : i32
    %50 = arith.extui %49 : i1 to i32
    %c0_i32_18 = arith.constant 0 : i32
    %51 = arith.cmpi ne, %50, %c0_i32_18 : i32
    scf.if %51 {
      %c0_19 = arith.constant 0 : index
      %c0_20 = arith.constant 0 : index
      %52 = vector.load %arg5[%c0_19, %c0_20] : memref<1x1xf32, #tpu.memory_space<vmem>>, vector<1x1xf32>
      %53 = vector.shape_cast %52 : vector<1x1xf32> to vector<1x1x1xf32>
      %c0_21 = arith.constant 0 : index
      %c0_22 = arith.constant 0 : index
      %c0_23 = arith.constant 0 : index
      %54 = vector.load %arg4[%c0_21, %c0_22, %c0_23] : memref<1x1x1xf32, #tpu.memory_space<vmem>>, vector<1x1x1xf32>
      tpu.vector_store %arg4[%c0_21, %c0_22, %c0_23], %53 {strides = array<i32>} : memref<1x1x1xf32, #tpu.memory_space<vmem>>, vector<1x1x1xf32>,
    } else {
    }
    return
  }
  func.func @transform_0(%arg0: i32, %arg1: i32) -> (i32, i32) {
    %c1_i32 = arith.constant 1 : i32
    %0 = arith.muli %arg0, %c1_i32 : i32
    %1 = arith.addi %0, %arg1 : i32
    %c0_i32 = arith.constant 0 : i32
    %2 = arith.minsi %1, %c0_i32 : i32
    %c0_i32_0 = arith.constant 0 : i32
    %c0_i32_1 = arith.constant 0 : i32
    return %2, %c0_i32_0 : i32, i32
  }
  func.func @transform_1(%arg0: i32, %arg1: i32) -> (i32, i32) {
    %c1_i32 = arith.constant 1 : i32
    %0 = arith.muli %arg0, %c1_i32 : i32
    %1 = arith.addi %0, %arg1 : i32
    %c0_i32 = arith.constant 0 : i32
    %2 = arith.minsi %1, %c0_i32 : i32
    %c0_i32_0 = arith.constant 0 : i32
    %c0_i32_1 = arith.constant 0 : i32
    return %2, %c0_i32_0 : i32, i32
  }
  func.func @transform_2(%arg0: i32, %arg1: i32) -> (i32, i32, i32) {
    %c0_i32 = arith.constant 0 : i32
    %c0_i32_0 = arith.constant 0 : i32
    %c0_i32_1 = arith.constant 0 : i32
    return %arg0, %c0_i32, %c0_i32_0 : i32, i32, i32
  }
}

</mosaic_0001>

<llo_original>
// kernel: tpu_custom_call.1
$region0: #{tpu_custom_call.1}
  #allocation0 [shape = 'u32[]', space=smem, size = 0x4, offset = 0x4, fixed_abs, tag = 'smem constant byte address 0x4 - core index']
  #allocation1 [shape = 'u32[144,128]{1,0:T(1,128)}', space=vmem, size = 0x12000, scoped, tag = 'internal scratch']
  #allocation2 [shape = 'f32[1,1]{1,0:T(1,128)}', space=vmem, size = 0x200, scoped, tag = 'scratch operand']
  %s0 = inlined_call_operand.vmem [shape: f32[8,32], index: 0, kind: input, shape index: {}]
  %s1 = inlined_call_operand.vmem [shape: s32[8,1], index: 1, kind: input, shape index: {}]
  %s2 = inlined_call_operand.hbm [shape: f32[1,1,1], index: 2, kind: output, shape index: {}]
  %s3 = sld [smem:[#allocation0]]
  $region26: #{tpu_custom_call.1} parent=0
    _
  %s5 = ssub.s32 1, %s3
  %s6 = scalar_select 0, %s5, %s3
  $region1: #{tpu_custom_call.1} parent=0
    #allocation3 [shape = 'u8[512]{0}', space=vmem, size = 0x400, scoped, tag = 'output window, operand 0, single buffered']
    #allocation4 [shape = 's32[1]{0}', space=sflag, size = 0x4, scoped, tag = 'scoped memory for tpu_custom_call.1']
    %7 = vsyncpa [#allocation4], 0
    // Predicated region
    $region2: #{tpu_custom_call.1} parent=1 // pred_check
      _
    $region3: #{tpu_custom_call.1} parent=1 // pred_check_branch
      %9 = sbr.rel (0) target = $region5
    $region4: #{tpu_custom_call.1} parent=1 // pred_region
      %s10 = sadd.s32 0, 0
      %p11 = scmp.lt.s32.totalorder %s10, 0
      %s12 = scalar_select %p11, %s10, 0
      %p13 = scmp.lt.s32.totalorder %s12, 0
      %s14 = scalar_select %p13, %s12, 0
      %s15 = smul.addr %s14, 8
      %s16 = scalar_lea.vmem %s0, %s15
      %s17 = sadd.s32 0, 0
      %p18 = scmp.lt.s32.totalorder %s17, 0
      %s19 = scalar_select %p18, %s17, 0
    $region5: #{tpu_custom_call.1} parent=1 // pred_fallthru
      _
    // Predicated region
    $region6: #{tpu_custom_call.1} parent=1 // pred_check
      _
    $region7: #{tpu_custom_call.1} parent=1 // pred_check_branch
      %21 = sbr.rel (0) target = $region9
    $region8: #{tpu_custom_call.1} parent=1 // pred_region
      %s22 = sadd.s32 0, 0
      %p23 = scmp.lt.s32.totalorder %s22, 0
      %s24 = scalar_select %p23, %s22, 0
      %p25 = scmp.lt.s32.totalorder %s24, 0
      %s26 = scalar_select %p25, %s24, 0
      %s27 = smul.addr %s26, 8
      %s28 = scalar_lea.vmem %s1, %s27
      %s29 = sadd.s32 0, 0
      %p30 = scmp.lt.s32.totalorder %s29, 0
      %s31 = scalar_select %p30, %s29, 0
    $region9: #{tpu_custom_call.1} parent=1 // pred_fallthru
      _
    %s32 = sadd.s32 0, 0
    %p33 = scmp.lt.s32.totalorder %s32, 0
    %s34 = scalar_select %p33, %s32, 0
    %p35 = scmp.lt.s32.totalorder %s34, 0
    %s36 = scalar_select %p35, %s34, 0
    %s37 = smul.addr %s36, 8
    %s38 = scalar_lea.vmem %s0, %s37
    %s39 = sadd.s32 0, 0
    %p40 = scmp.lt.s32.totalorder %s39, 0
    %s41 = scalar_select %p40, %s39, 0
    %p42 = scmp.lt.s32.totalorder %s41, 0
    %s43 = scalar_select %p42, %s41, 0
    %s44 = smul.addr %s43, 8
    %s45 = scalar_lea.vmem %s1, %s44
    %s46 = sadd.s32 0, 0
    %p47 = scmp.lt.s32.totalorder %s46, 0
    %s48 = scalar_select %p47, %s46, 0
    %p49 = scmp.lt.s32.totalorder %s48, 0
    %s50 = scalar_select %p49, %s48, 0
    %s51 = smul.addr %s50, 8
    %s52 = scalar_lea.vmem %s0, %s51
    %s53 = sadd.s32 0, 0
    %p54 = scmp.lt.s32.totalorder %s53, 0
    %s55 = scalar_select %p54, %s53, 0
    %s56 = sadd.s32 0, 0
    %p57 = scmp.lt.s32.totalorder %s56, 0
    %s58 = scalar_select %p57, %s56, 0
    %p59 = scmp.lt.s32.totalorder %s58, 0
    %s60 = scalar_select %p59, %s58, 0
    %s61 = smul.addr %s60, 8
    %s62 = scalar_lea.vmem %s1, %s61
    %s63 = sadd.s32 0, 0
    %p64 = scmp.lt.s32.totalorder %s63, 0
    %s65 = scalar_select %p64, %s63, 0
    %p66 = scmp.eq.s32.totalorder 0, 0
    // Predicated region
    $region10: #{tpu_custom_call.1} parent=1 // pred_check
      %p67 = pneg %p66
    $region11: #{tpu_custom_call.1} parent=1 // pred_check_branch
      %69 = sbr.rel (%p67) target = $region13
    $region12: #{tpu_custom_call.1} parent=1 // pred_region
      %vm70 = vcmask 0
      %71 = vst.msk [vmem:[#allocation2] sm:$0x1] %vm70, 0.0
    $region13: #{tpu_custom_call.1} parent=1 // pred_fallthru
      _
    %v72 = vld [vmem:[%s52] sm:$0xff]
    %v73 = vld [vmem:[%s62] sm:$0xff]
    %vm74 = vcmask 261120
    %v75 = vsel %vm74, %v72, -inf
    %76 = vmax.xlane.f32.xlu0 %v75
    %v77 = vpop.xlane.xlu0 %76
    %v78 = vsub.f32 %v72, %v77
    %v79 = vmul.f32 %v78, 1.442695
    %v80 = vpow.pop %v79
    %v81 = vsel %vm74, %v80, 0.0
    %82 = vadd.xlane.f32.xlu0 %v81
    %v83 = vpop.xlane.xlu0 %82
    %v84 = vlog2.pop %v83
    %v85 = vmul.f32 %v84, 0.6931472
    %v86 = vadd.f32 %v77, %v85
    %v87 = vlaneseq
    %v88 = vand.u32 %v87, 127
    %89 = vset.pattern.permute.xlu0 0
    %90 = vperm.xlu0 %89, %v73
    %v91 = vpop.permute.xlu0 %90
    %vm92 = vcmp.eq.s32.totalorder %v88, %v91
    %v93 = vsel %vm92, %v72, 0.0
    %v94 = vsel %vm74, %v93, 0.0
    %95 = vadd.xlane.f32.xlu0 %v94
    %v96 = vpop.xlane.xlu0 %95
    %v97 = vsub.f32 %v86, %v96
    %v98 = vsub.f32 0.0, %v97
    %v99 = vmul.f32 %v98, 1.442695
    %v100 = vpow.pop %v99
    %v101 = vsub.f32 1.0, %v100
    %v102 = vmul.f32 %v101, 0.9
    %v103 = vmul.f32 %v102, %v101
    %v104 = vmul.f32 %v103, %v97
    %s105 = sadd.s32 0, 0
    %s106 = smul.u32 %s105, 8
    %v107 = vlaneseq
    %v108 = vshrl.u32 %v107, 7
    %v109 = vstv %s106
    %v110 = vadd.s32 %v109, %v108
    %vm111 = vcmp.lt.s32.totalorder %v110, 8
    %v112 = vsel %vm111, %v104, 0.0
    %v113 = vld [vmem:[#allocation2] sm:$0x1]
    %vm114 = vcmask 7168
    %v115 = vsel %vm114, %v112, 0.0
    %116 = vadd.xlane.f32.xlu0 %v115
    %v117 = vpop.xlane.xlu0 %116
    %v118 = vrot.slane %v117, 4
    %v119 = vadd.f32 %v117, %v118
    %v120 = vrot.slane %v119, 2
    %v121 = vadd.f32 %v119, %v120
    %v122 = vrot.slane %v121, 1
    %v123 = vadd.f32 %v121, %v122
    %s124 = vtos %v123
    %v125 = vstv %s124
    %v126 = vadd.f32 %v113, %v125
    %vm127 = vcmask 0
    %128 = vst.msk [vmem:[#allocation2] sm:$0x1] %vm127, %v126
    // Predicated region
    $region14: #{tpu_custom_call.1} parent=1 // pred_check
      %p129 = pneg %p66
    $region15: #{tpu_custom_call.1} parent=1 // pred_check_branch
      %131 = sbr.rel (%p129) target = $region17
    $region16: #{tpu_custom_call.1} parent=1 // pred_region
      %v132 = vld [vmem:[#allocation2] sm:$0x1]
      %133 = vst.msk [vmem:[#allocation3] sm:$0x1] %vm127, %v132
    $region17: #{tpu_custom_call.1} parent=1 // pred_fallthru
      _
    // Predicated region
    $region18: #{tpu_custom_call.1} parent=1 // pred_check
      _
    $region19: #{tpu_custom_call.1} parent=1 // pred_check_branch
      %135 = sbr.rel (0) target = $region21
    $region20: #{tpu_custom_call.1} parent=1 // pred_region
      %s137 = ssub.s32 16, 16
      %138 = vsyncadd [#allocation4], %s137
      %s140 = sshll.u32 [#allocation3], 4
      %s141 = int_to_ptr.vmem [resolvable:$true] %s140
      %143 = dma.vmem_to_hbm [thread:$0]  %s141, 16, %s2, [#allocation4]
    $region21: #{tpu_custom_call.1} parent=1 // pred_fallthru
      _
    // Predicated region
    $region22: #{tpu_custom_call.1} parent=1 // pred_check
      _
    $region23: #{tpu_custom_call.1} parent=1 // pred_check_branch
      %145 = sbr.rel (0) target = $region25
    $region24: #{tpu_custom_call.1} parent=1 // pred_region
      %146 = dma.done [#allocation4], 16
    $region25: #{tpu_custom_call.1} parent=1 // pred_fallthru
      _
    %147 = vsyncpa [#allocation4], 1

</llo_original>
